<compile_context>
chip_gen: v7x
topology: tpu7x:2x2x1
jax: 0.10.0
libtpu: 0.0.40
codegen_flags: <defaults>
</compile_context>

<pallas_src>
import functools

import jax
import jax.numpy as jnp
from jax.experimental import pallas as pl
from jax.experimental.pallas import tpu as pltpu


def _round_up(x, m):
    return ((x + m - 1) // m) * m


def _vmem_capacity_bytes():
    """Physical VMEM per TensorCore; conservative fallback if query fails."""
    try:
        return int(pltpu.get_tpu_info().vmem_capacity_bytes)
    except Exception:
        return 64 * 1024 * 1024      # v7x-sized floor: safe on every generation


def _select_tiles(B, S, D, itemsize, tile_budget_bytes):
    """Pick (tB, tS) so the double-buffered embedding tile fills VMEM.

    - tB: biggest of (128, 64, 32, 16, 8) while keeping >= 2 batch blocks when
      the (padded) batch allows it, so the "parallel" axis can shard across the
      2 TensorCores on v7x.
    - tS: biggest of (1024, ..., 16) (multiples of 16 for bf16 sublane packing)
      such that the tile fits the per-buffer budget.  If even tS=16 does not
      fit, shrink tB.
    """
    b_pad8 = _round_up(max(B, 1), 8)
    tB = max(c for c in (128, 64, 32, 16, 8) if c <= max(b_pad8 // 2, 8))
    if b_pad8 < 16:
        tB = b_pad8

    s_cap = _round_up(max(S, 16), 16)
    while True:
        row_bytes = tB * D * itemsize
        tS = 0
        for c in (1024, 512, 256, 128, 64, 32, 16):
            if c <= s_cap and c * row_bytes <= tile_budget_bytes:
                tS = c
                break
        if tS or tB <= 8:
            break
        tB //= 2                      # tile too big even at tS=16: shrink tB
    if tS == 0:
        tS = 16                       # last resort (only for enormous D)
    return tB, tS


def bert_classifier_kernel(inv_rest, emb_ref, w_ref, b_ref, out_ref,
                           acc_ref, cls_ref):
    """Pooling (cls + mean of rest tokens) + linear classifier.

    emb_ref: (tB, tS, D) bf16/f32 VMEM tile of the embeddings
    w_ref:   (D, C_pad)  bf16 VMEM (pre-transposed, zero-padded weight)
    b_ref:   (1, C_pad)  f32 VMEM (zero-padded bias)
    out_ref: (tB, C_pad) f32 VMEM (resident across the seq grid axis)
    acc_ref: (tB, D)     f32 VMEM scratch (running token sum)
    cls_ref: (tB, D)     f32 VMEM scratch (CLS embedding)
    """
    s = pl.program_id(1)

    @pl.when(s == 0)
    def _init():
        acc_ref[...] = jnp.zeros_like(acc_ref)
        cls_ref[...] = emb_ref[:, 0, :].astype(jnp.float32)   # CLS in tile 0

    # Fused widen + reduce over the sequence (sublane) axis: the bf16 tile is
    # never materialized as an f32 VMEM temporary; accumulation is f32.
    acc_ref[...] += jnp.sum(emb_ref[...], axis=1, dtype=jnp.float32)

    @pl.when(s == pl.num_programs(1) - 1)
    def _epilogue():
        cls = cls_ref[...]                            # (tB, D)
        total = acc_ref[...]                          # (tB, D)
        # mean over tokens 1..S-1 == (sum over all real tokens - cls)/(S-1);
        # zero-padded tokens contribute 0 to the sum.
        pooled = cls + (total - cls) * jnp.float32(inv_rest)
        # bf16 MXU path with f32 accumulation.
        logits = jnp.dot(pooled.astype(w_ref.dtype), w_ref[...],
                         preferred_element_type=jnp.float32)  # (tB, C_pad)
        out_ref[...] = (logits + b_ref[...]).astype(out_ref.dtype)


def prepare_classifier_params(weight, bias):
    """One-time prep: transpose + zero-pad classifier params (hoisted out of
    the per-call wrapper). Weight kept in bf16 for the MXU path / half VMEM."""
    C, D = weight.shape
    C_pad = 128 * pl.cdiv(C, 128)
    w_t = jnp.zeros((D, C_pad), jnp.bfloat16).at[:, :C].set(
        weight.T.astype(jnp.bfloat16))
    b_pad = jnp.zeros((1, C_pad), jnp.float32).at[0, :C].set(
        bias.astype(jnp.float32))
    return w_t, b_pad, C


def bert_classifier_forward(embeddings, w_t, b_pad, n_classes):
    """embeddings (B,S,D) [bf16 or f32], w_t (D,C_pad) bf16, b_pad (1,C_pad) f32
    -> logits (B, n_classes) f32."""
    B, S, D = embeddings.shape
    C_pad = w_t.shape[1]
    emb_bytes = embeddings.dtype.itemsize

    # VMEM budget: ~48 MiB scoped on v7x (64 MiB physical), 96 MiB on v5e/v6e
    # (128 MiB physical); embedding tile gets ~1/3 of it per pipeline buffer.
    vmem_limit = min(96 * 1024 * 1024, (3 * _vmem_capacity_bytes()) // 4)
    tile_budget = vmem_limit // 3

    tB, tS = _select_tiles(B, S, D, emb_bytes, tile_budget)
    B_pad = _round_up(B, tB)
    S_pad = _round_up(S, tS)
    if B_pad != B or S_pad != S:
        # Zero-pad instead of a full-dim fallback block: padded tokens add 0 to
        # the sum; the mean below divides by the true S-1.
        embeddings = jnp.pad(
            embeddings, ((0, B_pad - B), (0, S_pad - S), (0, 0)))

    grid = (B_pad // tB, S_pad // tS)

    # Deliberate deviation from the PyTorch reference: for S == 1 the reference
    # mean over an empty slice is NaN; here the guard returns the CLS row.
    inv_rest = 1.0 / float(max(S - 1, 1))

    cost = pl.CostEstimate(
        flops=B_pad * S_pad * D + 2 * B_pad * D * C_pad + 4 * B_pad * D
              + B_pad * C_pad,
        transcendentals=0,
        bytes_accessed=(B_pad * S_pad * D * emb_bytes
                        + D * C_pad * w_t.dtype.itemsize
                        + C_pad * 4 + B_pad * C_pad * 4),
    )

    out_pad = pl.pallas_call(
        functools.partial(bert_classifier_kernel, inv_rest),
        out_shape=jax.ShapeDtypeStruct((B_pad, C_pad), jnp.float32),
        grid_spec=pltpu.PrefetchScalarGridSpec(
            num_scalar_prefetch=0,
            grid=grid,
            in_specs=[
                # Double-buffered (default) streaming embedding tile.
                pl.BlockSpec((tB, tS, D), lambda i, s: (i, s, 0)),
                # Grid-invariant weight/bias: single buffer reclaims VMEM for
                # the embedding tile.
                pl.BlockSpec((D, C_pad), lambda i, s: (0, 0),
                             pipeline_mode=pl.Buffered(1)),
                pl.BlockSpec((1, C_pad), lambda i, s: (0, 0),
                             pipeline_mode=pl.Buffered(1)),
            ],
            out_specs=pl.BlockSpec((tB, C_pad), lambda i, s: (i, 0)),
            scratch_shapes=[
                pltpu.VMEM((tB, D), jnp.float32),   # running token sum
                pltpu.VMEM((tB, D), jnp.float32),   # CLS embedding
            ],
        ),
        compiler_params=pltpu.CompilerParams(
            dimension_semantics=("parallel", "arbitrary"),
            vmem_limit_bytes=vmem_limit,
        ),
        cost_estimate=cost,
    )(embeddings, w_t, b_pad)

    return out_pad[:B, :n_classes]


def reference_forward(embeddings, weight, bias):
    cls_embedding = embeddings[:, 0, :]
    rest_embedding = jnp.mean(embeddings[:, 1:, :], axis=1)
    pooled = cls_embedding + rest_embedding
    return pooled @ weight.T + bias


if __name__ == "__main__":
    # Small shapes consistent with the module's forward; B=12 / S=40 exercise
    # the batch/seq zero-padding path and a (2, 2) grid (2 batch blocks, 2 seq
    # steps through the accumulator).
    B, S, D, C = 12, 40, 32, 5

    key = jax.random.PRNGKey(0)
    k_emb, k_w, k_b = jax.random.split(key, 3)

    # Stand-in for BERT embedding output (BERT backbone not provided), bf16 to
    # halve HBM traffic on the dominant read.
    embeddings = jax.random.normal(k_emb, (B, S, D),
                                   dtype=jnp.float32).astype(jnp.bfloat16)

    # Deterministic init of classifier params (nn.Linear(d_embed, n_classes)).
    bound = 1.0 / (D ** 0.5)
    weight = jax.random.uniform(k_w, (C, D), minval=-bound, maxval=bound,
                                dtype=jnp.float32)
    bias = jax.random.uniform(k_b, (C,), minval=-bound, maxval=bound,
                              dtype=jnp.float32)

    w_t, b_pad, n_classes = prepare_classifier_params(weight, bias)
    out = bert_classifier_forward(embeddings, w_t, b_pad, n_classes)
    out = jax.block_until_ready(out)

    ref = reference_forward(embeddings.astype(jnp.float32), weight, bias)
    assert out.shape == (B, C)
    # bf16 MXU epilogue (bf16 pooled x bf16 weight, f32 accumulate) vs f32 ref.
    assert jnp.allclose(out, ref, atol=2e-2, rtol=2e-2), "mismatch vs reference"

    print("KERNEL_OK")
</pallas_src>

<mosaic_0001>
module attributes {stable_mosaic.version = 11 : i64} {
  func.func @bert_classifier_kernel(%arg0: i32, %arg1: i32, %arg2: memref<8x32x32xbf16, #tpu.memory_space<vmem>>, %arg3: memref<32x128xbf16, #tpu.memory_space<vmem>>, %arg4: memref<1x128xf32, #tpu.memory_space<vmem>>, %arg5: memref<8x128xf32, #tpu.memory_space<vmem>>, %arg6: memref<8x32xf32, #tpu.memory_space<vmem>>, %arg7: memref<8x32xf32, #tpu.memory_space<vmem>>) attributes {dimension_semantics = [#tpu.dimension_semantics<parallel>, #tpu.dimension_semantics<arbitrary>], iteration_bounds = array<i64: 2, 2>, scalar_prefetch = 0 : i64, scratch_operands = 2 : i64, tpu.core_type = #tpu.core_type<tc>, window_params = [{transform_indices = @transform_0, window_bounds = array<i64: 8, 32, 32>}, {pipeline_mode = #tpu.pipeline_mode<synchronous>, transform_indices = @transform_1, window_bounds = array<i64: 32, 128>}, {pipeline_mode = #tpu.pipeline_mode<synchronous>, transform_indices = @transform_2, window_bounds = array<i64: 1, 128>}, {transform_indices = @transform_3, window_bounds = array<i64: 8, 128>}]} {
    %c0_i32 = arith.constant 0 : i32
    %0 = arith.cmpi eq, %arg1, %c0_i32 : i32
    %1 = arith.extui %0 : i1 to i32
    %c0_i32_0 = arith.constant 0 : i32
    %2 = arith.cmpi ne, %1, %c0_i32_0 : i32
    scf.if %2 {
      %cst_8 = arith.constant 0.000000e+00 : f32
      %12 = vector.broadcast %cst_8 : f32 to vector<8x32xf32>
      %c0_9 = arith.constant 0 : index
      %c0_10 = arith.constant 0 : index
      %13 = vector.load %arg6[%c0_9, %c0_10] : memref<8x32xf32, #tpu.memory_space<vmem>>, vector<8x32xf32>
      tpu.vector_store %arg6[%c0_9, %c0_10], %12 {strides = array<i32>} : memref<8x32xf32, #tpu.memory_space<vmem>>, vector<8x32xf32>,
      %c0_11 = arith.constant 0 : index
      %c0_12 = arith.constant 0 : index
      %c0_13 = arith.constant 0 : index
      %14 = vector.load %arg2[%c0_11, %c0_12, %c0_13] : memref<8x32x32xbf16, #tpu.memory_space<vmem>>, vector<8x1x32xbf16>
      %15 = vector.shape_cast %14 : vector<8x1x32xbf16> to vector<8x32xbf16>
      %16 = arith.extf %15 : vector<8x32xbf16> to vector<8x32xf32>
      %c0_14 = arith.constant 0 : index
      %c0_15 = arith.constant 0 : index
      %17 = vector.load %arg7[%c0_14, %c0_15] : memref<8x32xf32, #tpu.memory_space<vmem>>, vector<8x32xf32>
      tpu.vector_store %arg7[%c0_14, %c0_15], %16 {strides = array<i32>} : memref<8x32xf32, #tpu.memory_space<vmem>>, vector<8x32xf32>,
    } else {
    }
    %c0 = arith.constant 0 : index
    %c0_1 = arith.constant 0 : index
    %3 = vector.load %arg6[%c0, %c0_1] : memref<8x32xf32, #tpu.memory_space<vmem>>, vector<8x32xf32>
    %c0_2 = arith.constant 0 : index
    %c0_3 = arith.constant 0 : index
    %c0_4 = arith.constant 0 : index
    %4 = vector.load %arg2[%c0_2, %c0_3, %c0_4] : memref<8x32x32xbf16, #tpu.memory_space<vmem>>, vector<8x32x32xbf16>
    %5 = arith.extf %4 : vector<8x32x32xbf16> to vector<8x32x32xf32>
    %cst = arith.constant dense<0.000000e+00> : vector<8x32xf32>
    %6 = vector.multi_reduction <add>, %5, %cst [1] : vector<8x32x32xf32> to vector<8x32xf32>
    %7 = arith.addf %3, %6 : vector<8x32xf32>
    %c0_5 = arith.constant 0 : index
    %c0_6 = arith.constant 0 : index
    %8 = vector.load %arg6[%c0_5, %c0_6] : memref<8x32xf32, #tpu.memory_space<vmem>>, vector<8x32xf32>
    tpu.vector_store %arg6[%c0_5, %c0_6], %7 {strides = array<i32>} : memref<8x32xf32, #tpu.memory_space<vmem>>, vector<8x32xf32>,
    %c1_i32 = arith.constant 1 : i32
    %9 = arith.cmpi eq, %arg1, %c1_i32 : i32
    %10 = arith.extui %9 : i1 to i32
    %c0_i32_7 = arith.constant 0 : i32
    %11 = arith.cmpi ne, %10, %c0_i32_7 : i32
    scf.if %11 {
      %c0_8 = arith.constant 0 : index
      %c0_9 = arith.constant 0 : index
      %12 = vector.load %arg7[%c0_8, %c0_9] : memref<8x32xf32, #tpu.memory_space<vmem>>, vector<8x32xf32>
      %c0_10 = arith.constant 0 : index
      %c0_11 = arith.constant 0 : index
      %13 = vector.load %arg6[%c0_10, %c0_11] : memref<8x32xf32, #tpu.memory_space<vmem>>, vector<8x32xf32>
      %14 = arith.subf %13, %12 : vector<8x32xf32>
      %cst_12 = arith.constant 0.025641026 : f32
      %15 = vector.broadcast %cst_12 : f32 to vector<8x32xf32>
      %16 = arith.mulf %14, %15 : vector<8x32xf32>
      %17 = arith.addf %12, %16 : vector<8x32xf32>
      %18 = arith.truncf %17 : vector<8x32xf32> to vector<8x32xbf16>
      %c0_13 = arith.constant 0 : index
      %c0_14 = arith.constant 0 : index
      %19 = vector.load %arg3[%c0_13, %c0_14] : memref<32x128xbf16, #tpu.memory_space<vmem>>, vector<32x128xbf16>
      %cst_15 = arith.constant dense<0.000000e+00> : vector<8x128xf32>
      %20 = tpu.matmul %18, %19, %cst_15 {dimension_numbers = #tpu.dot_dimension_numbers<[1], [0], [0], [1], [0, 0, 1, 1], [], []>} : vector<8x32xbf16>, vector<32x128xbf16>, vector<8x128xf32> -> vector<8x128xf32>
      %c0_16 = arith.constant 0 : index
      %c0_17 = arith.constant 0 : index
      %21 = vector.load %arg4[%c0_16, %c0_17] : memref<1x128xf32, #tpu.memory_space<vmem>>, vector<1x128xf32>
      %22 = vector.broadcast %21 : vector<1x128xf32> to vector<8x128xf32>
      %23 = arith.addf %20, %22 : vector<8x128xf32>
      %c0_18 = arith.constant 0 : index
      %c0_19 = arith.constant 0 : index
      %24 = vector.load %arg5[%c0_18, %c0_19] : memref<8x128xf32, #tpu.memory_space<vmem>>, vector<8x128xf32>
      tpu.vector_store %arg5[%c0_18, %c0_19], %23 {strides = array<i32>} : memref<8x128xf32, #tpu.memory_space<vmem>>, vector<8x128xf32>,
    } else {
    }
    return
  }
  func.func @transform_0(%arg0: i32, %arg1: i32) -> (i32, i32, i32) {
    %c0_i32 = arith.constant 0 : i32
    %c0_i32_0 = arith.constant 0 : i32
    return %arg0, %arg1, %c0_i32 : i32, i32, i32
  }
  func.func @transform_1(%arg0: i32, %arg1: i32) -> (i32, i32) {
    %c0_i32 = arith.constant 0 : i32
    %c0_i32_0 = arith.constant 0 : i32
    %c0_i32_1 = arith.constant 0 : i32
    return %c0_i32, %c0_i32_0 : i32, i32
  }
  func.func @transform_2(%arg0: i32, %arg1: i32) -> (i32, i32) {
    %c0_i32 = arith.constant 0 : i32
    %c0_i32_0 = arith.constant 0 : i32
    %c0_i32_1 = arith.constant 0 : i32
    return %c0_i32, %c0_i32_0 : i32, i32
  }
  func.func @transform_3(%arg0: i32, %arg1: i32) -> (i32, i32) {
    %c0_i32 = arith.constant 0 : i32
    %c0_i32_0 = arith.constant 0 : i32
    return %arg0, %c0_i32 : i32, i32
  }
}

</mosaic_0001>

<llo_original>
// kernel: tpu_custom_call.1
$region0: #{tpu_custom_call.1}
  #allocation0 [shape = 'u32[]', space=smem, size = 0x4, offset = 0x4, fixed_abs, tag = 'smem constant byte address 0x4 - core index']
  #allocation1 [shape = 'u32[144,128]{1,0:T(1,128)}', space=vmem, size = 0x12000, scoped, tag = 'internal scratch']
  #allocation2 [shape = 'f32[8,32]{1,0:T(8,128)}', space=vmem, size = 0x1000, scoped, tag = 'scratch operand']
  #allocation3 [shape = 'f32[8,32]{1,0:T(8,128)}', space=vmem, size = 0x1000, scoped, tag = 'scratch operand']
  %s0 = inlined_call_operand.vmem [shape: bf16[16,64,32], index: 0, kind: input, shape index: {}]
  %s1 = inlined_call_operand.vmem [shape: bf16[32,128], index: 1, kind: input, shape index: {}]
  %s2 = inlined_call_operand.vmem [shape: f32[1,128], index: 2, kind: input, shape index: {}]
  %s3 = inlined_call_operand.hbm [shape: f32[16,128], index: 3, kind: output, shape index: {}]
  %s4 = sld [smem:[#allocation0]]
  $region94: #{tpu_custom_call.1} parent=0
    _
  %s6 = ssub.s32 1, %s4
  %s7 = scalar_select 0, %s6, %s4
  $region1: #{tpu_custom_call.1} parent=0
    #allocation4 [shape = 'u8[131072]{0}', space=vmem, size = 0x20000, scoped, tag = 'input window, operand 0']
    #allocation5 [shape = 'u8[8192]{0}', space=vmem, size = 0x2000, scoped, tag = 'output window, operand 0']
    #allocation6 [shape = 's32[2]{0}', space=sflag, size = 0x8, scoped, tag = 'scoped memory for tpu_custom_call.1']
    %8 = vsyncpa [#allocation6], 0
    %s9 = scalar_lea.sflag [#allocation6], 1
    %10 = vsyncpa %s9, 0
    loop: start=0, step=1, limit=6
    $region2: #{tpu_custom_call.1} parent=1 // loop_pre_header
      _
    $region3: #{tpu_custom_call.1} parent=1 // loop_header
      %s12 = sphi 0, %s16
      %p13 = scmp.ge.s32.totalorder %s12, 6
      %s19 = sphi 0, %s31
      %s20 = sphi 0, %s27
      %s21 = sphi 0, %s19
      %s22 = sphi 0, %s20
      %s23 = sphi 0, %s21
      %s24 = sphi 0, %s22
      %s36 = sphi 0, %s38
      %s39 = sphi 0, %s36
      %s40 = sphi 0, %s39
      %s56 = sphi 0, %s40
      %s60 = sphi 0, %s60
      %s62 = sphi 0, %s60
      %s63 = sphi 0, %s62
      %s77 = sphi 0, %s63
      %s81 = sphi 0, %s81
      %s83 = sphi 0, %s81
      %s84 = sphi 0, %s83
      %s98 = sphi 0, %s84
      %s104 = sphi 0, %s106
      %s107 = sphi 0, %s104
      %s108 = sphi 0, %s107
      %s124 = sphi 0, %s108
    $region4: #{tpu_custom_call.1} parent=1 // loop_header_branch
      %15 = sbr.rel (%p13) target = $region8
    $region5: #{tpu_custom_call.1} parent=1 // loop_body
      %s17 = ssub.s32 %s12, 1
      %s18 = ssub.s32 %s12, 2
      %s25 = sadd.s32 1, %s20
      %p26 = scmp.ge.s32.totalorder %s25, 2
      %s27 = scalar_select %p26, 0, %s25
      %s28 = sadd.s32 1, %s19
      %s29 = scalar_select %p26, %s28, %s19
      %p30 = scmp.ge.s32.totalorder %s29, 2
      %s31 = scalar_select %p30, 0, %s29
      %s32 = ssub.s32 %s19, %s31
      %s33 = ssub.s32 %s20, %s27
      %s34 = sor.u32 %s32, %s33
      %p35 = scmp.eq.s32.totalorder %s34, 0
      %s37 = sadd.s32 %s36, 1
      %s38 = scalar_select %p35, %s36, %s37
      %p41 = pneg %p35
      %p42 = scmp.eq.s32.totalorder %s12, 3
      %p43 = por %p41, %p42
      %p44 = scmp.ne.s32.totalorder %s36, %s39
      %p45 = scmp.eq.s32.totalorder %s12, 0
      %p46 = por %p44, %p45
      %p47 = scmp.ne.s32.totalorder %s36, %s39
      %p48 = scmp.eq.s32.totalorder %s17, 3
      %p49 = por %p47, %p48
      %p50 = scmp.ne.s32.totalorder %s39, %s40
      %p51 = scmp.eq.s32.totalorder %s17, 0
      %p52 = por %p50, %p51
      %p53 = scmp.ne.s32.totalorder %s39, %s40
      %p54 = scmp.eq.s32.totalorder %s18, 3
      %p55 = por %p53, %p54
      %p57 = scmp.ne.s32.totalorder %s40, %s56
      %p58 = scmp.eq.s32.totalorder %s18, 0
      %p59 = por %p57, %p58
      %s61 = sadd.s32 %s60, 1
      %p64 = scmp.eq.s32.totalorder %s12, 3
      %p65 = scmp.ne.s32.totalorder %s60, %s62
      %p66 = scmp.eq.s32.totalorder %s12, 0
      %p67 = por %p65, %p66
      %p68 = scmp.ne.s32.totalorder %s60, %s62
      %p69 = scmp.eq.s32.totalorder %s17, 3
      %p70 = por %p68, %p69
      %p71 = scmp.ne.s32.totalorder %s62, %s63
      %p72 = scmp.eq.s32.totalorder %s17, 0
      %p73 = por %p71, %p72
      %p74 = scmp.ne.s32.totalorder %s62, %s63
      %p75 = scmp.eq.s32.totalorder %s18, 3
      %p76 = por %p74, %p75
      %p78 = scmp.ne.s32.totalorder %s63, %s77
      %p79 = scmp.eq.s32.totalorder %s18, 0
      %p80 = por %p78, %p79
      %s82 = sadd.s32 %s81, 1
      %p85 = scmp.eq.s32.totalorder %s12, 3
      %p86 = scmp.ne.s32.totalorder %s81, %s83
      %p87 = scmp.eq.s32.totalorder %s12, 0
      %p88 = por %p86, %p87
      %p89 = scmp.ne.s32.totalorder %s81, %s83
      %p90 = scmp.eq.s32.totalorder %s17, 3
      %p91 = por %p89, %p90
      %p92 = scmp.ne.s32.totalorder %s83, %s84
      %p93 = scmp.eq.s32.totalorder %s17, 0
      %p94 = por %p92, %p93
      %p95 = scmp.ne.s32.totalorder %s83, %s84
      %p96 = scmp.eq.s32.totalorder %s18, 3
      %p97 = por %p95, %p96
      %p99 = scmp.ne.s32.totalorder %s84, %s98
      %p100 = scmp.eq.s32.totalorder %s18, 0
      %p101 = por %p99, %p100
      %s102 = ssub.s32 %s19, %s31
      %p103 = scmp.eq.s32.totalorder %s102, 0
      %s105 = sadd.s32 %s104, 1
      %s106 = scalar_select %p103, %s104, %s105
      %p109 = pneg %p103
      %p110 = scmp.eq.s32.totalorder %s12, 3
      %p111 = por %p109, %p110
      %p112 = scmp.ne.s32.totalorder %s104, %s107
      %p113 = scmp.eq.s32.totalorder %s12, 0
      %p114 = por %p112, %p113
      %p115 = scmp.ne.s32.totalorder %s104, %s107
      %p116 = scmp.eq.s32.totalorder %s17, 3
      %p117 = por %p115, %p116
      %p118 = scmp.ne.s32.totalorder %s107, %s108
      %p119 = scmp.eq.s32.totalorder %s17, 0
      %p120 = por %p118, %p119
      %p121 = scmp.ne.s32.totalorder %s107, %s108
      %p122 = scmp.eq.s32.totalorder %s18, 3
      %p123 = por %p121, %p122
      %p125 = scmp.ne.s32.totalorder %s108, %s124
      %p126 = scmp.eq.s32.totalorder %s18, 0
      %p127 = por %p125, %p126
      %p128 = scmp.le.s32.totalorder 1, %s12
      %p129 = scmp.lt.s32.totalorder %s12, 5
      %p130 = pnand %p128, %p129
      %p131 = pneg %p130
      // Predicated region
      $region9: #{tpu_custom_call.1} parent=5 // pred_check
        _
      $region10: #{tpu_custom_call.1} parent=5 // pred_check_branch
        %133 = sbr.rel (%p130) target = $region12
      $region11: #{tpu_custom_call.1} parent=5 // pred_region
        %s134 = ssub.s32 %s12, 1
        // Predicated region
        $region13: #{tpu_custom_call.1} parent=11 // pred_check
          %p135 = pneg %p73
        $region14: #{tpu_custom_call.1} parent=11 // pred_check_branch
          %137 = sbr.rel (%p135) target = $region16
        $region15: #{tpu_custom_call.1} parent=11 // pred_region
          _
        $region16: #{tpu_custom_call.1} parent=11 // pred_fallthru
          _
        // Predicated region
        $region17: #{tpu_custom_call.1} parent=11 // pred_check
          %p138 = pneg %p94
        $region18: #{tpu_custom_call.1} parent=11 // pred_check_branch
          %140 = sbr.rel (%p138) target = $region20
        $region19: #{tpu_custom_call.1} parent=11 // pred_region
          _
        $region20: #{tpu_custom_call.1} parent=11 // pred_fallthru
          _
      $region12: #{tpu_custom_call.1} parent=5 // pred_fallthru
        _
      %p141 = scmp.lt.s32.totalorder %s12, 4
      // Predicated region
      $region21: #{tpu_custom_call.1} parent=5 // pred_check
        %p142 = pneg %p141
      $region22: #{tpu_custom_call.1} parent=5 // pred_check_branch
        %144 = sbr.rel (%p142) target = $region24
      $region23: #{tpu_custom_call.1} parent=5 // pred_region
        // Predicated region
        $region25: #{tpu_custom_call.1} parent=23 // pred_check
          %p145 = pneg %p46
        $region26: #{tpu_custom_call.1} parent=23 // pred_check_branch
          %147 = sbr.rel (%p145) target = $region28
        $region27: #{tpu_custom_call.1} parent=23 // pred_region
          %s148 = sand.u32 %s36, 1
          %s149 = sand.u32 %s36, 1
          %s150 = smul.addr %s149, 128
          %s151 = scalar_lea.vmem [#allocation4], %s150
          %s152 = smul.u32 8, %s19
          %s153 = smul.u32 4, %s20
          %s154 = smul.addr %s152, 8
          %s155 = sadd.s32 %s153, %s154
          %s156 = smul.addr %s155, 4
          %s157 = scalar_lea.vmem %s0, %s156
          // Predicated region
          $region29: #{tpu_custom_call.1} parent=27 // pred_check
            _
          $region30: #{tpu_custom_call.1} parent=27 // pred_check_branch
            %159 = sbr.rel (0) target = $region32
          $region31: #{tpu_custom_call.1} parent=27 // pred_region
            // Predicated region
            $region33: #{tpu_custom_call.1} parent=31 // pred_check
              _
            $region34: #{tpu_custom_call.1} parent=31 // pred_check_branch
              %161 = sbr.rel target = $region36
            $region35: #{tpu_custom_call.1} parent=31 // pred_region
              // Predicated region
              $region48: #{tpu_custom_call.1} parent=35 // pred_check
                _
              $region49: #{tpu_custom_call.1} parent=35 // pred_check_branch
                %238 = sbr.rel (0) target = $region51
              $region50: #{tpu_custom_call.1} parent=35 // pred_region
                loop: start=0, step=1, limit=1
                $region52: #{tpu_custom_call.1} parent=50 // loop_pre_header
                  _
                $region53: #{tpu_custom_call.1} parent=50 // loop_header
                  %s240 = sphi 0, %s244
                  %p241 = scmp.ge.s32.totalorder %s240, 1
                  %s245 = sphi %s157, %s157
                  %s246 = sphi %s151, %s151
                $region54: #{tpu_custom_call.1} parent=50 // loop_header_branch
                  %243 = sbr.rel (%p241) target = $region58
                $region55: #{tpu_custom_call.1} parent=50 // loop_body
                  _
                $region56: #{tpu_custom_call.1} parent=50 // loop_footer
                  %s244 = sadd.s32 1, %s240
                $region57: #{tpu_custom_call.1} parent=50 // loop_footer_branch
                  %239 = sbr.rel target = $region53
                $region58: #{tpu_custom_call.1} parent=50 // loop_exit
                  _
                loop: start=0, step=1, limit=1
                $region59: #{tpu_custom_call.1} parent=50 // loop_pre_header
                  _
                $region60: #{tpu_custom_call.1} parent=50 // loop_header
                  %s249 = sphi 0, %s253
                  %p250 = scmp.ge.s32.totalorder %s249, 1
                  %s254 = sphi %s157, %s157
                  %s255 = sphi %s151, %s151
                $region61: #{tpu_custom_call.1} parent=50 // loop_header_branch
                  %252 = sbr.rel (%p250) target = $region65
                $region62: #{tpu_custom_call.1} parent=50 // loop_body
                  %v256 = vld [vmem:[%s254] sm:$0xf]
                  %257 = vst [vmem:[%s255] sm:$0xf] %v256
                  %v258 = vld [vmem:[%s254 + $0x4] sm:$0xf]
                  %259 = vst [vmem:[%s255 + $0x4] sm:$0xf] %v258
                  %v260 = vld [vmem:[%s254 + $0x8] sm:$0xf]
                  %261 = vst [vmem:[%s255 + $0x8] sm:$0xf] %v260
                  %v262 = vld [vmem:[%s254 + $0xc] sm:$0xf]
                  %263 = vst [vmem:[%s255 + $0xc] sm:$0xf] %v262
                  %v264 = vld [vmem:[%s254 + $0x20] sm:$0xf]
                  %265 = vst [vmem:[%s255 + $0x10] sm:$0xf] %v264
                  %v266 = vld [vmem:[%s254 + $0x24] sm:$0xf]
                  %267 = vst [vmem:[%s255 + $0x14] sm:$0xf] %v266
                  %v268 = vld [vmem:[%s254 + $0x28] sm:$0xf]
                  %269 = vst [vmem:[%s255 + $0x18] sm:$0xf] %v268
                  %v270 = vld [vmem:[%s254 + $0x2c] sm:$0xf]
                  %271 = vst [vmem:[%s255 + $0x1c] sm:$0xf] %v270
                  %v272 = vld [vmem:[%s254 + $0x40] sm:$0xf]
                  %273 = vst [vmem:[%s255 + $0x20] sm:$0xf] %v272
                  %v274 = vld [vmem:[%s254 + $0x44] sm:$0xf]
                  %275 = vst [vmem:[%s255 + $0x24] sm:$0xf] %v274
                  %v276 = vld [vmem:[%s254 + $0x48] sm:$0xf]
                  %277 = vst [vmem:[%s255 + $0x28] sm:$0xf] %v276
                  %v278 = vld [vmem:[%s254 + $0x4c] sm:$0xf]
                  %279 = vst [vmem:[%s255 + $0x2c] sm:$0xf] %v278
                  %v280 = vld [vmem:[%s254 + $0x60] sm:$0xf]
                  %281 = vst [vmem:[%s255 + $0x30] sm:$0xf] %v280
                  %v282 = vld [vmem:[%s254 + $0x64] sm:$0xf]
                  %283 = vst [vmem:[%s255 + $0x34] sm:$0xf] %v282
                  %v284 = vld [vmem:[%s254 + $0x68] sm:$0xf]
                  %285 = vst [vmem:[%s255 + $0x38] sm:$0xf] %v284
                  %v286 = vld [vmem:[%s254 + $0x6c] sm:$0xf]
                  %287 = vst [vmem:[%s255 + $0x3c] sm:$0xf] %v286
                  %v288 = vld [vmem:[%s254 + $0x80] sm:$0xf]
                  %289 = vst [vmem:[%s255 + $0x40] sm:$0xf] %v288
                  %v290 = vld [vmem:[%s254 + $0x84] sm:$0xf]
                  %291 = vst [vmem:[%s255 + $0x44] sm:$0xf] %v290
                  %v292 = vld [vmem:[%s254 + $0x88] sm:$0xf]
                  %293 = vst [vmem:[%s255 + $0x48] sm:$0xf] %v292
                  %v294 = vld [vmem:[%s254 + $0x8c] sm:$0xf]
                  %295 = vst [vmem:[%s255 + $0x4c] sm:$0xf] %v294
                  %v296 = vld [vmem:[%s254 + $0xa0] sm:$0xf]
                  %297 = vst [vmem:[%s255 + $0x50] sm:$0xf] %v296
                  %v298 = vld [vmem:[%s254 + $0xa4] sm:$0xf]
                  %299 = vst [vmem:[%s255 + $0x54] sm:$0xf] %v298
                  %v300 = vld [vmem:[%s254 + $0xa8] sm:$0xf]
                  %301 = vst [vmem:[%s255 + $0x58] sm:$0xf] %v300
                  %v302 = vld [vmem:[%s254 + $0xac] sm:$0xf]
                  %303 = vst [vmem:[%s255 + $0x5c] sm:$0xf] %v302
                  %v304 = vld [vmem:[%s254 + $0xc0] sm:$0xf]
                  %305 = vst [vmem:[%s255 + $0x60] sm:$0xf] %v304
                  %v306 = vld [vmem:[%s254 + $0xc4] sm:$0xf]
                  %307 = vst [vmem:[%s255 + $0x64] sm:$0xf] %v306
                  %v308 = vld [vmem:[%s254 + $0xc8] sm:$0xf]
                  %309 = vst [vmem:[%s255 + $0x68] sm:$0xf] %v308
                  %v310 = vld [vmem:[%s254 + $0xcc] sm:$0xf]
                  %311 = vst [vmem:[%s255 + $0x6c] sm:$0xf] %v310
                  %v312 = vld [vmem:[%s254 + $0xe0] sm:$0xf]
                  %313 = vst [vmem:[%s255 + $0x70] sm:$0xf] %v312
                  %v314 = vld [vmem:[%s254 + $0xe4] sm:$0xf]
                  %315 = vst [vmem:[%s255 + $0x74] sm:$0xf] %v314
                  %v316 = vld [vmem:[%s254 + $0xe8] sm:$0xf]
                  %317 = vst [vmem:[%s255 + $0x78] sm:$0xf] %v316
                  %v318 = vld [vmem:[%s254 + $0xec] sm:$0xf]
                  %319 = vst [vmem:[%s255 + $0x7c] sm:$0xf] %v318
                $region63: #{tpu_custom_call.1} parent=50 // loop_footer
                  %s253 = sadd.s32 1, %s249
                $region64: #{tpu_custom_call.1} parent=50 // loop_footer_branch
                  %248 = sbr.rel target = $region60
                $region65: #{tpu_custom_call.1} parent=50 // loop_exit
                  _
              $region51: #{tpu_custom_call.1} parent=35 // pred_fallthru
                _
            $region36: #{tpu_custom_call.1} parent=31 // pred_fallthru
              _
            // Predicated region
            $region37: #{tpu_custom_call.1} parent=31 // pred_check
              _
            $region38: #{tpu_custom_call.1} parent=31 // pred_check_branch
              %163 = sbr.rel (0) target = $region40
            $region39: #{tpu_custom_call.1} parent=31 // pred_region
              loop: start=0, step=1, limit=1
              $region41: #{tpu_custom_call.1} parent=39 // loop_pre_header
                _
              $region42: #{tpu_custom_call.1} parent=39 // loop_header
                %s166 = sphi 0, %s170
                %p167 = scmp.ge.s32.totalorder %s166, 1
                %s171 = sphi %s157, %s157
                %s172 = sphi %s151, %s151
              $region43: #{tpu_custom_call.1} parent=39 // loop_header_branch
                %169 = sbr.rel (%p167) target = $region47
              $region44: #{tpu_custom_call.1} parent=39 // loop_body
                %v173 = vld [vmem:[%s171] sm:$0xf]
                %174 = vst [vmem:[%s172] sm:$0xf] %v173
                %v175 = vld [vmem:[%s171 + $0x4] sm:$0xf]
                %176 = vst [vmem:[%s172 + $0x4] sm:$0xf] %v175
                %v177 = vld [vmem:[%s171 + $0x8] sm:$0xf]
                %178 = vst [vmem:[%s172 + $0x8] sm:$0xf] %v177
                %v179 = vld [vmem:[%s171 + $0xc] sm:$0xf]
                %180 = vst [vmem:[%s172 + $0xc] sm:$0xf] %v179
                %v181 = vld [vmem:[%s171 + $0x20] sm:$0xf]
                %182 = vst [vmem:[%s172 + $0x10] sm:$0xf] %v181
                %v183 = vld [vmem:[%s171 + $0x24] sm:$0xf]
                %184 = vst [vmem:[%s172 + $0x14] sm:$0xf] %v183
                %v185 = vld [vmem:[%s171 + $0x28] sm:$0xf]
                %186 = vst [vmem:[%s172 + $0x18] sm:$0xf] %v185
                %v187 = vld [vmem:[%s171 + $0x2c] sm:$0xf]
                %188 = vst [vmem:[%s172 + $0x1c] sm:$0xf] %v187
                %v189 = vld [vmem:[%s171 + $0x40] sm:$0xf]
                %190 = vst [vmem:[%s172 + $0x20] sm:$0xf] %v189
                %v191 = vld [vmem:[%s171 + $0x44] sm:$0xf]
                %192 = vst [vmem:[%s172 + $0x24] sm:$0xf] %v191
                %v193 = vld [vmem:[%s171 + $0x48] sm:$0xf]
                %194 = vst [vmem:[%s172 + $0x28] sm:$0xf] %v193
                %v195 = vld [vmem:[%s171 + $0x4c] sm:$0xf]
                %196 = vst [vmem:[%s172 + $0x2c] sm:$0xf] %v195
                %v197 = vld [vmem:[%s171 + $0x60] sm:$0xf]
                %198 = vst [vmem:[%s172 + $0x30] sm:$0xf] %v197
                %v199 = vld [vmem:[%s171 + $0x64] sm:$0xf]
                %200 = vst [vmem:[%s172 + $0x34] sm:$0xf] %v199
                %v201 = vld [vmem:[%s171 + $0x68] sm:$0xf]
                %202 = vst [vmem:[%s172 + $0x38] sm:$0xf] %v201
                %v203 = vld [vmem:[%s171 + $0x6c] sm:$0xf]
                %204 = vst [vmem:[%s172 + $0x3c] sm:$0xf] %v203
                %v205 = vld [vmem:[%s171 + $0x80] sm:$0xf]
                %206 = vst [vmem:[%s172 + $0x40] sm:$0xf] %v205
                %v207 = vld [vmem:[%s171 + $0x84] sm:$0xf]
                %208 = vst [vmem:[%s172 + $0x44] sm:$0xf] %v207
                %v209 = vld [vmem:[%s171 + $0x88] sm:$0xf]
                %210 = vst [vmem:[%s172 + $0x48] sm:$0xf] %v209
                %v211 = vld [vmem:[%s171 + $0x8c] sm:$0xf]
                %212 = vst [vmem:[%s172 + $0x4c] sm:$0xf] %v211
                %v213 = vld [vmem:[%s171 + $0xa0] sm:$0xf]
                %214 = vst [vmem:[%s172 + $0x50] sm:$0xf] %v213
                %v215 = vld [vmem:[%s171 + $0xa4] sm:$0xf]
                %216 = vst [vmem:[%s172 + $0x54] sm:$0xf] %v215
                %v217 = vld [vmem:[%s171 + $0xa8] sm:$0xf]
                %218 = vst [vmem:[%s172 + $0x58] sm:$0xf] %v217
                %v219 = vld [vmem:[%s171 + $0xac] sm:$0xf]
                %220 = vst [vmem:[%s172 + $0x5c] sm:$0xf] %v219
                %v221 = vld [vmem:[%s171 + $0xc0] sm:$0xf]
                %222 = vst [vmem:[%s172 + $0x60] sm:$0xf] %v221
                %v223 = vld [vmem:[%s171 + $0xc4] sm:$0xf]
                %224 = vst [vmem:[%s172 + $0x64] sm:$0xf] %v223
                %v225 = vld [vmem:[%s171 + $0xc8] sm:$0xf]
                %226 = vst [vmem:[%s172 + $0x68] sm:$0xf] %v225
                %v227 = vld [vmem:[%s171 + $0xcc] sm:$0xf]
                %228 = vst [vmem:[%s172 + $0x6c] sm:$0xf] %v227
                %v229 = vld [vmem:[%s171 + $0xe0] sm:$0xf]
                %230 = vst [vmem:[%s172 + $0x70] sm:$0xf] %v229
                %v231 = vld [vmem:[%s171 + $0xe4] sm:$0xf]
                %232 = vst [vmem:[%s172 + $0x74] sm:$0xf] %v231
                %v233 = vld [vmem:[%s171 + $0xe8] sm:$0xf]
                %234 = vst [vmem:[%s172 + $0x78] sm:$0xf] %v233
                %v235 = vld [vmem:[%s171 + $0xec] sm:$0xf]
                %236 = vst [vmem:[%s172 + $0x7c] sm:$0xf] %v235
              $region45: #{tpu_custom_call.1} parent=39 // loop_footer
                %s170 = sadd.s32 1, %s166
              $region46: #{tpu_custom_call.1} parent=39 // loop_footer_branch
                %165 = sbr.rel target = $region42
              $region47: #{tpu_custom_call.1} parent=39 // loop_exit
                _
            $region40: #{tpu_custom_call.1} parent=31 // pred_fallthru
              _
          $region32: #{tpu_custom_call.1} parent=27 // pred_fallthru
            _
          %320 = vnop
        $region28: #{tpu_custom_call.1} parent=23 // pred_fallthru
          _
      $region24: #{tpu_custom_call.1} parent=5 // pred_fallthru
        _
      %p321 = scmp.le.s32.totalorder 1, %s12
      %p322 = scmp.lt.s32.totalorder %s12, 5
      %p323 = pnand %p321, %p322
      %p324 = pneg %p323
      // Predicated region
      $region66: #{tpu_custom_call.1} parent=5 // pred_check
        _
      $region67: #{tpu_custom_call.1} parent=5 // pred_check_branch
        %326 = sbr.rel (%p323) target = $region69
      $region68: #{tpu_custom_call.1} parent=5 // pred_region
        %s327 = ssub.s32 %s12, 1
        %s328 = sand.u32 %s39, 1
        %s329 = sand.u32 %s39, 1
        %s330 = smul.addr %s329, 128
        %s331 = scalar_lea.vmem [#allocation4], %s330
        // Predicated region
        $region70: #{tpu_custom_call.1} parent=68 // pred_check
          %p332 = pneg %p52
        $region71: #{tpu_custom_call.1} parent=68 // pred_check_branch
          %334 = sbr.rel (%p332) target = $region73
        $region72: #{tpu_custom_call.1} parent=68 // pred_region
          _
        $region73: #{tpu_custom_call.1} parent=68 // pred_fallthru
          _
        %s335 = sand.u32 %s39, 1
        %s336 = sand.u32 %s39, 1
        %s337 = smul.addr %s336, 128
        %s338 = scalar_lea.vmem [#allocation4], %s337
        %p339 = pneg %p52
        %p340 = pneg %p49
        %p341 = pneg %p73
        %p342 = pneg %p70
        %p343 = pneg %p94
        %p344 = pneg %p91
        %p345 = pneg %p120
        %p346 = pneg %p117
        %s347 = sand.u32 %s107, 1
        %s348 = scalar_lea.sflag [#allocation6], %s347
        %s349 = sand.u32 %s107, 1
        %s350 = smul.addr %s349, 8
        %s351 = scalar_lea.vmem [#allocation5], %s350
        %s352 = smul.u32 8, %s21
        %s353 = smul.u32 4, %s22
        %p355 = scmp.eq.s32.totalorder %s22, 0
        // Predicated region
        $region74: #{tpu_custom_call.1} parent=68 // pred_check
          %p356 = pneg %p355
        $region75: #{tpu_custom_call.1} parent=68 // pred_check_branch
          %358 = sbr.rel (%p356) target = $region77
        $region76: #{tpu_custom_call.1} parent=68 // pred_region
          %vm359 = vcmask 261120
          %360 = vst.msk [vmem:[#allocation2] sm:$0xff] %vm359, 0.0
          %v361 = vld [vmem:[%s331] sm:$0x1]
          %v362 = vld [vmem:[%s331 + $0x10] sm:$0x1]
          %v363 = vld [vmem:[%s331 + $0x20] sm:$0x1]
          %v364 = vld [vmem:[%s331 + $0x30] sm:$0x1]
          %v365 = vld [vmem:[%s331 + $0x40] sm:$0x1]
          %v366 = vld [vmem:[%s331 + $0x50] sm:$0x1]
          %v367 = vld [vmem:[%s331 + $0x60] sm:$0x1]
          %v368 = vld [vmem:[%s331 + $0x70] sm:$0x1]
          %v369 = vunpack.c.l.bf16 %v361
          %v370 = vunpack.c.l.bf16 %v362
          %v371 = vunpack.c.l.bf16 %v363
          %v372 = vunpack.c.l.bf16 %v364
          %v373 = vunpack.c.l.bf16 %v365
          %v374 = vunpack.c.l.bf16 %v366
          %v375 = vunpack.c.l.bf16 %v367
          %v376 = vunpack.c.l.bf16 %v368
          %v385 = vrot.slane %v370, 7
          %vm386 = vcmask 1041409
          %v387 = vsel %vm386, %v385, %v369
          %v388 = vrot.slane %v371, 6
          %vm389 = vcmask 1042434
          %v390 = vsel %vm389, %v388, %v387
          %v391 = vrot.slane %v372, 5
          %vm392 = vcmask 1043459
          %v393 = vsel %vm392, %v391, %v390
          %v394 = vrot.slane %v373, 4
          %vm395 = vcmask 1044484
          %v396 = vsel %vm395, %v394, %v393
          %v397 = vrot.slane %v374, 3
          %vm398 = vcmask 1045509
          %v399 = vsel %vm398, %v397, %v396
          %v400 = vrot.slane %v375, 2
          %vm401 = vcmask 1046534
          %v402 = vsel %vm401, %v400, %v399
          %v403 = vrot.slane %v376, 1
          %vm404 = vcmask 1047559
          %v405 = vsel %vm404, %v403, %v402
          %407 = vst.msk [vmem:[#allocation3] sm:$0xff] %vm359, %v405
        $region77: #{tpu_custom_call.1} parent=68 // pred_fallthru
          _
        %v408 = vld [vmem:[#allocation2] sm:$0xff]
        %v409 = vld [vmem:[%s331] sm:$0xf]
        %v410 = vld [vmem:[%s331 + $0x4] sm:$0xf]
        %v411 = vld [vmem:[%s331 + $0x8] sm:$0xf]
        %v412 = vld [vmem:[%s331 + $0xc] sm:$0xf]
        %v413 = vld [vmem:[%s331 + $0x10] sm:$0xf]
        %v414 = vld [vmem:[%s331 + $0x14] sm:$0xf]
        %v415 = vld [vmem:[%s331 + $0x18] sm:$0xf]
        %v416 = vld [vmem:[%s331 + $0x1c] sm:$0xf]
        %v417 = vld [vmem:[%s331 + $0x20] sm:$0xf]
        %v418 = vld [vmem:[%s331 + $0x24] sm:$0xf]
        %v419 = vld [vmem:[%s331 + $0x28] sm:$0xf]
        %v420 = vld [vmem:[%s331 + $0x2c] sm:$0xf]
        %v421 = vld [vmem:[%s331 + $0x30] sm:$0xf]
        %v422 = vld [vmem:[%s331 + $0x34] sm:$0xf]
        %v423 = vld [vmem:[%s331 + $0x38] sm:$0xf]
        %v424 = vld [vmem:[%s331 + $0x3c] sm:$0xf]
        %v425 = vld [vmem:[%s331 + $0x40] sm:$0xf]
        %v426 = vld [vmem:[%s331 + $0x44] sm:$0xf]
        %v427 = vld [vmem:[%s331 + $0x48] sm:$0xf]
        %v428 = vld [vmem:[%s331 + $0x4c] sm:$0xf]
        %v429 = vld [vmem:[%s331 + $0x50] sm:$0xf]
        %v430 = vld [vmem:[%s331 + $0x54] sm:$0xf]
        %v431 = vld [vmem:[%s331 + $0x58] sm:$0xf]
        %v432 = vld [vmem:[%s331 + $0x5c] sm:$0xf]
        %v433 = vld [vmem:[%s331 + $0x60] sm:$0xf]
        %v434 = vld [vmem:[%s331 + $0x64] sm:$0xf]
        %v435 = vld [vmem:[%s331 + $0x68] sm:$0xf]
        %v436 = vld [vmem:[%s331 + $0x6c] sm:$0xf]
        %v437 = vld [vmem:[%s331 + $0x70] sm:$0xf]
        %v438 = vld [vmem:[%s331 + $0x74] sm:$0xf]
        %v439 = vld [vmem:[%s331 + $0x78] sm:$0xf]
        %v440 = vld [vmem:[%s331 + $0x7c] sm:$0xf]
        %v441 = vunpack.c.l.bf16 %v409
        %v442 = vunpack.c.l.bf16 %v410
        %v443 = vunpack.c.l.bf16 %v411
        %v444 = vunpack.c.l.bf16 %v412
        %v445 = vunpack.c.l.bf16 %v413
        %v446 = vunpack.c.l.bf16 %v414
        %v447 = vunpack.c.l.bf16 %v415
        %v448 = vunpack.c.l.bf16 %v416
        %v449 = vunpack.c.l.bf16 %v417
        %v450 = vunpack.c.l.bf16 %v418
        %v451 = vunpack.c.l.bf16 %v419
        %v452 = vunpack.c.l.bf16 %v420
        %v453 = vunpack.c.l.bf16 %v421
        %v454 = vunpack.c.l.bf16 %v422
        %v455 = vunpack.c.l.bf16 %v423
        %v456 = vunpack.c.l.bf16 %v424
        %v457 = vunpack.c.l.bf16 %v425
        %v458 = vunpack.c.l.bf16 %v426
        %v459 = vunpack.c.l.bf16 %v427
        %v460 = vunpack.c.l.bf16 %v428
        %v461 = vunpack.c.l.bf16 %v429
        %v462 = vunpack.c.l.bf16 %v430
        %v463 = vunpack.c.l.bf16 %v431
        %v464 = vunpack.c.l.bf16 %v432
        %v465 = vunpack.c.l.bf16 %v433
        %v466 = vunpack.c.l.bf16 %v434
        %v467 = vunpack.c.l.bf16 %v435
        %v468 = vunpack.c.l.bf16 %v436
        %v469 = vunpack.c.l.bf16 %v437
        %v470 = vunpack.c.l.bf16 %v438
        %v471 = vunpack.c.l.bf16 %v439
        %v472 = vunpack.c.l.bf16 %v440
        %vm473 = vcmask 261120
        %v474 = vsel %vm473, %v441, 0.0
        %v475 = vsel %vm473, %v442, 0.0
        %v476 = vadd.f32 %v474, %v475
        %v477 = vsel %vm473, %v443, 0.0
        %v478 = vadd.f32 %v476, %v477
        %v479 = vsel %vm473, %v444, 0.0
        %v480 = vadd.f32 %v478, %v479
        %v481 = vrot.slane %v480, 4
        %v482 = vadd.f32 %v480, %v481
        %v483 = vrot.slane %v482, 2
        %v484 = vadd.f32 %v482, %v483
        %v485 = vrot.slane %v484, 1
        %v486 = vadd.f32 %v484, %v485
        %v487 = vsel %vm473, %v445, 0.0
        %v488 = vsel %vm473, %v446, 0.0
        %v489 = vadd.f32 %v487, %v488
        %v490 = vsel %vm473, %v447, 0.0
        %v491 = vadd.f32 %v489, %v490
        %v492 = vsel %vm473, %v448, 0.0
        %v493 = vadd.f32 %v491, %v492
        %v494 = vrot.slane %v493, 4
        %v495 = vadd.f32 %v493, %v494
        %v496 = vrot.slane %v495, 2
        %v497 = vadd.f32 %v495, %v496
        %v498 = vrot.slane %v497, 1
        %v499 = vadd.f32 %v497, %v498
        %v500 = vsel %vm473, %v449, 0.0
        %v501 = vsel %vm473, %v450, 0.0
        %v502 = vadd.f32 %v500, %v501
        %v503 = vsel %vm473, %v451, 0.0
        %v504 = vadd.f32 %v502, %v503
        %v505 = vsel %vm473, %v452, 0.0
        %v506 = vadd.f32 %v504, %v505
        %v507 = vrot.slane %v506, 4
        %v508 = vadd.f32 %v506, %v507
        %v509 = vrot.slane %v508, 2
        %v510 = vadd.f32 %v508, %v509
        %v511 = vrot.slane %v510, 1
        %v512 = vadd.f32 %v510, %v511
        %v513 = vsel %vm473, %v453, 0.0
        %v514 = vsel %vm473, %v454, 0.0
        %v515 = vadd.f32 %v513, %v514
        %v516 = vsel %vm473, %v455, 0.0
        %v517 = vadd.f32 %v515, %v516
        %v518 = vsel %vm473, %v456, 0.0
        %v519 = vadd.f32 %v517, %v518
        %v520 = vrot.slane %v519, 4
        %v521 = vadd.f32 %v519, %v520
        %v522 = vrot.slane %v521, 2
        %v523 = vadd.f32 %v521, %v522
        %v524 = vrot.slane %v523, 1
        %v525 = vadd.f32 %v523, %v524
        %v526 = vsel %vm473, %v457, 0.0
        %v527 = vsel %vm473, %v458, 0.0
        %v528 = vadd.f32 %v526, %v527
        %v529 = vsel %vm473, %v459, 0.0
        %v530 = vadd.f32 %v528, %v529
        %v531 = vsel %vm473, %v460, 0.0
        %v532 = vadd.f32 %v530, %v531
        %v533 = vrot.slane %v532, 4
        %v534 = vadd.f32 %v532, %v533
        %v535 = vrot.slane %v534, 2
        %v536 = vadd.f32 %v534, %v535
        %v537 = vrot.slane %v536, 1
        %v538 = vadd.f32 %v536, %v537
        %v539 = vsel %vm473, %v461, 0.0
        %v540 = vsel %vm473, %v462, 0.0
        %v541 = vadd.f32 %v539, %v540
        %v542 = vsel %vm473, %v463, 0.0
        %v543 = vadd.f32 %v541, %v542
        %v544 = vsel %vm473, %v464, 0.0
        %v545 = vadd.f32 %v543, %v544
        %v546 = vrot.slane %v545, 4
        %v547 = vadd.f32 %v545, %v546
        %v548 = vrot.slane %v547, 2
        %v549 = vadd.f32 %v547, %v548
        %v550 = vrot.slane %v549, 1
        %v551 = vadd.f32 %v549, %v550
        %v552 = vsel %vm473, %v465, 0.0
        %v553 = vsel %vm473, %v466, 0.0
        %v554 = vadd.f32 %v552, %v553
        %v555 = vsel %vm473, %v467, 0.0
        %v556 = vadd.f32 %v554, %v555
        %v557 = vsel %vm473, %v468, 0.0
        %v558 = vadd.f32 %v556, %v557
        %v559 = vrot.slane %v558, 4
        %v560 = vadd.f32 %v558, %v559
        %v561 = vrot.slane %v560, 2
        %v562 = vadd.f32 %v560, %v561
        %v563 = vrot.slane %v562, 1
        %v564 = vadd.f32 %v562, %v563
        %v565 = vsel %vm473, %v469, 0.0
        %v566 = vsel %vm473, %v470, 0.0
        %v567 = vadd.f32 %v565, %v566
        %v568 = vsel %vm473, %v471, 0.0
        %v569 = vadd.f32 %v567, %v568
        %v570 = vsel %vm473, %v472, 0.0
        %v571 = vadd.f32 %v569, %v570
        %v572 = vrot.slane %v571, 4
        %v573 = vadd.f32 %v571, %v572
        %v574 = vrot.slane %v573, 2
        %v575 = vadd.f32 %v573, %v574
        %v576 = vrot.slane %v575, 1
        %v577 = vadd.f32 %v575, %v576
        %vm586 = vcmask 1041409
        %v587 = vsel %vm586, %v499, %v486
        %vm588 = vcmask 1042434
        %v589 = vsel %vm588, %v512, %v587
        %vm590 = vcmask 1043459
        %v591 = vsel %vm590, %v525, %v589
        %vm592 = vcmask 1044484
        %v593 = vsel %vm592, %v538, %v591
        %vm594 = vcmask 1045509
        %v595 = vsel %vm594, %v551, %v593
        %vm596 = vcmask 1046534
        %v597 = vsel %vm596, %v564, %v595
        %vm598 = vcmask 1047559
        %v599 = vsel %vm598, %v577, %v597
        %v601 = vadd.f32 %v408, %v599
        %602 = vst.msk [vmem:[#allocation2] sm:$0xff] %vm473, %v601
        %p603 = scmp.eq.s32.totalorder %s22, 1
        // Predicated region
        $region78: #{tpu_custom_call.1} parent=68 // pred_check
          %p604 = pneg %p603
        $region79: #{tpu_custom_call.1} parent=68 // pred_check_branch
          %606 = sbr.rel (%p604) target = $region81
        $region80: #{tpu_custom_call.1} parent=68 // pred_region
          %v607 = vld [vmem:[#allocation3] sm:$0xff]
          %v608 = vld [vmem:[#allocation2] sm:$0xff]
          %v609 = vsub.f32 %v608, %v607
          %v610 = vmul.f32 %v609, 0.025641026
          %v611 = vadd.f32 %v607, %v610
          %v612 = vpack.c.bf16 %v611, %v611
          %v613 = vld [vmem:[%s1] sm:$0xf]
          %v614 = vld [vmem:[%s1 + $0x4] sm:$0xf]
          %v615 = vld [vmem:[%s1 + $0x8] sm:$0xf]
          %v616 = vld [vmem:[%s1 + $0xc] sm:$0xf]
          %v617 = vld [vmem:[%s2] sm:$0x1]
          %v619 = vlaneseq
          %v620 = vshrl.u32 %v619, 7
          %v621 = vsub.s32 0, %v620
          %v622 = vrot.slane %v617, %v621
          %v628 = vunpack.c.l.b16 %v613
          %v629 = vunpack.c.l.b16 %v614
          %v630 = vunpack.c.l.b16 %v615
          %v631 = vunpack.c.l.b16 %v616
          %v632 = vpack.c.b16 %v629, %v628
          %v633 = vpack.c.b16 %v631, %v630
          %v637 = vsel %vm473, %v612, 0
          %639 = vmatprep.subr.bf16.mxu0 0
          %640 = vmatpush1.bf16.msra.mxu0 %v632
          %641 = vmatprep.subr.bf16.mxu0 0
          %642 = vmatpush1.bf16.msra.mxu0 %v633
          %643 = vmatprep.subr.bf16.mxu0 0
          %644 = vmatpush1.bf16.msra.mxu0 0
          %645 = vmatprep.subr.bf16.mxu0 0
          %646 = vmatpush1.bf16.msra.mxu0 0
          %647 = vmatprep.subr.bf16.mxu0 0
          %648 = vmatpush1.bf16.msra.mxu0 0
          %649 = vmatprep.subr.bf16.mxu0 0
          %650 = vmatpush1.bf16.msra.mxu0 0
          %651 = vmatprep.subr.bf16.mxu0 0
          %652 = vmatpush1.bf16.msra.mxu0 0
          %653 = vmatprep.subr.bf16.mxu0 0
          %654 = vmatpush1.bf16.msra.mxu0 0
          %655 = vmatprep.subr.bf16.mxu0 0
          %656 = vmatpush1.bf16.msra.mxu0 0
          %657 = vmatprep.subr.bf16.mxu0 0
          %658 = vmatpush1.bf16.msra.mxu0 0
          %659 = vmatprep.subr.bf16.mxu0 0
          %660 = vmatpush1.bf16.msra.mxu0 0
          %661 = vmatprep.subr.bf16.mxu0 0
          %662 = vmatpush1.bf16.msra.mxu0 0
          %663 = vmatprep.subr.bf16.mxu0 0
          %664 = vmatpush1.bf16.msra.mxu0 0
          %665 = vmatprep.subr.bf16.mxu0 0
          %666 = vmatpush1.bf16.msra.mxu0 0
          %667 = vmatprep.subr.bf16.mxu0 0
          %668 = vmatpush1.bf16.msra.mxu0 0
          %669 = vmatprep.subr.bf16.mxu0 0
          %670 = vmatpush1.bf16.msra.mxu0 0
          %671 = vmatprep.mubr.bf16.mxu0 0
          %672 = vmatmul.mubr.bf16.gmra.mrb[0].mxu0 %v637
          %v673 = vpop.f32.mrb[0].mxu0
          %v674 = vadd.f32 %v622, %v673
          %v675 = vpop.f32.mrb[0].mxu0
          %v676 = vpop.f32.mrb[0].mxu0
          %v677 = vpop.f32.mrb[0].mxu0
          %678 = vdwg.mxu0
          %679 = vst [vmem:[%s351] sm:$0xff] %v674
        $region81: #{tpu_custom_call.1} parent=68 // pred_fallthru
          _
        %s680 = sand.u32 %s107, 1
        %s681 = scalar_lea.sflag [#allocation6], %s680
        %s682 = sand.u32 %s107, 1
        %s683 = smul.addr %s682, 8
        %s684 = scalar_lea.vmem [#allocation5], %s683
        // Predicated region
        $region82: #{tpu_custom_call.1} parent=68 // pred_check
          %p685 = pneg %p117
        $region83: #{tpu_custom_call.1} parent=68 // pred_check_branch
          %687 = sbr.rel (%p685) target = $region85
        $region84: #{tpu_custom_call.1} parent=68 // pred_region
          %s689 = ssub.s32 128, 128
          %690 = vsyncadd %s681, %s689
          %s691 = smul.addr %s21, 128
          %s692 = scalar_lea.hbm %s3, %s691
          %s694 = sshll.u32 %s684, 4
          %s695 = int_to_ptr.vmem [resolvable:$true] %s694
          %697 = dma.vmem_to_hbm [thread:$0]  %s695, 128, %s692, %s681
        $region85: #{tpu_custom_call.1} parent=68 // pred_fallthru
          _
      $region69: #{tpu_custom_call.1} parent=5 // pred_fallthru
        _
      %p698 = scmp.le.s32.totalorder 2, %s12
      // Predicated region
      $region86: #{tpu_custom_call.1} parent=5 // pred_check
        %p699 = pneg %p698
      $region87: #{tpu_custom_call.1} parent=5 // pred_check_branch
        %701 = sbr.rel (%p699) target = $region89
      $region88: #{tpu_custom_call.1} parent=5 // pred_region
        %s702 = ssub.s32 %s12, 2
        // Predicated region
        $region90: #{tpu_custom_call.1} parent=88 // pred_check
          %p703 = pneg %p123
        $region91: #{tpu_custom_call.1} parent=88 // pred_check_branch
          %705 = sbr.rel (%p703) target = $region93
        $region92: #{tpu_custom_call.1} parent=88 // pred_region
          %s706 = sand.u32 %s108, 1
          %s707 = scalar_lea.sflag [#allocation6], %s706
          %s708 = sand.u32 %s108, 1
          %s709 = smul.addr %s708, 8
          %s710 = scalar_lea.vmem [#allocation5], %s709
          %711 = dma.done %s707, 128
        $region93: #{tpu_custom_call.1} parent=88 // pred_fallthru
          _
      $region89: #{tpu_custom_call.1} parent=5 // pred_fallthru
        _
    $region6: #{tpu_custom_call.1} parent=1 // loop_footer
      %s16 = sadd.s32 1, %s12
    $region7: #{tpu_custom_call.1} parent=1 // loop_footer_branch
      %11 = sbr.rel target = $region3
    $region8: #{tpu_custom_call.1} parent=1 // loop_exit
      _
    %712 = vsyncpa [#allocation6], 1
    %s713 = scalar_lea.sflag [#allocation6], 1
    %714 = vsyncpa %s713, 1

</llo_original>
